<compile_context>
chip_gen: v7x
topology: tpu7x:2x2x1
jax: 0.10.0
libtpu: 0.0.40
codegen_flags: <defaults>
</compile_context>

<pallas_src>
import jax
import jax.numpy as jnp
from jax.experimental import pallas as pl
from jax.experimental.pallas import tpu as pltpu

_LANES = 128


def _ceil_div(a, b):
    return -(-a // b)


def _round_up(a, b):
    return _ceil_div(a, b) * b


def _h_swish_kernel(x_ref, o_ref):
    x = x_ref[...]
    h_sig = jnp.clip(x + 3.0, 0.0, 6.0) * (1.0 / 6.0)   # hard-sigmoid, h_max = 1
    o_ref[...] = (x * h_sig).astype(o_ref.dtype)         # h_swish = x * h_sigmoid(x)


def _h_swish_jnp(x):
    """Plain-JAX fallback for tiny tails (<128 elements)."""
    return (x * (jnp.clip(x + 3.0, 0.0, 6.0) * (1.0 / 6.0))).astype(x.dtype)


def _generation_params():
    """(target_block_bytes, vmem_limit_bytes) tuned per TPU generation."""
    kind = ""
    try:
        kind = jax.devices()[0].device_kind.lower()
    except Exception:
        pass
    vmem = None
    try:
        vmem = pltpu.get_tpu_info().vmem_capacity_bytes
    except Exception:
        vmem = None
    is_v7x = ("v7" in kind) or (vmem is not None and vmem <= 80 * 1024 * 1024)
    if is_v7x:
        # v7x HBM ~3.2 TB/s: 8 MiB blocks keep the ~0.35us/step overhead ~6-7%.
        # Double-buffered in+out footprint = 32 MiB, inside 64 MiB/TC VMEM.
        return 8 * 1024 * 1024, 40 * 1024 * 1024
    # v5e/v6e: 4 MiB blocks already amortize the per-step overhead to a few %;
    # explicit 32 MiB limit lifts v5e's 16 MiB default scoped-VMEM ceiling.
    return 4 * 1024 * 1024, 32 * 1024 * 1024


def _choose_block_rows(rows, itemsize, target_block_bytes):
    """Rows per block: ~target_block_bytes, sublane-aligned, v7x-friendly grid."""
    sub = {4: 8, 2: 16, 1: 32}.get(itemsize, 8)
    bytes_per_row = _LANES * itemsize

    if rows <= sub:
        return rows  # single block equal to the full array dims (always legal)

    tr = max(sub, (target_block_bytes // bytes_per_row) // sub * sub)

    if rows <= tr:
        if rows < 4 * sub:
            return rows  # tiny slab: one full-array block
        # Split into ~4 blocks so both v7x TCs get >=2 pipelined blocks each
        # (no cost on single-TC v5e/v6e).
        tr = _round_up(_ceil_div(rows, 4), sub)

    # Prefer an even number of grid steps (balanced across v7x's 2 TCs).
    steps = _ceil_div(rows, tr)
    if steps > 1 and steps % 2 == 1:
        tr_even = max(sub, _round_up(_ceil_div(rows, steps + 1), sub))
        if _ceil_div(rows, tr_even) % 2 == 0:
            tr = tr_even
    return tr


def _run_pallas_2d(x2d, target_block_bytes, vmem_limit_bytes, alias_input):
    rows = x2d.shape[0]
    dtype = x2d.dtype
    itemsize = jnp.dtype(dtype).itemsize
    n = x2d.size

    tr = _choose_block_rows(rows, itemsize, target_block_bytes)
    grid = (_ceil_div(rows, tr),)  # ceil-div; ragged last block is masked

    extra = {"input_output_aliases": {0: 0}} if alias_input else {}
    return pl.pallas_call(
        _h_swish_kernel,
        out_shape=jax.ShapeDtypeStruct((rows, _LANES), dtype),
        grid=grid,
        in_specs=[pl.BlockSpec((tr, _LANES), lambda i: (i, 0))],
        out_specs=pl.BlockSpec((tr, _LANES), lambda i: (i, 0)),
        compiler_params=pltpu.CompilerParams(
            # NOTE: "parallel" is expected to shard the axis across v7x's two
            # TensorCores; if a profile shows it does not, switch to
            # pltpu.CORE_PARALLEL / an explicit core axis.
            dimension_semantics=("parallel",),
            vmem_limit_bytes=vmem_limit_bytes,
        ),
        cost_estimate=pl.CostEstimate(
            flops=5 * n, transcendentals=0, bytes_accessed=2 * n * itemsize),
        **extra,
    )(x2d)


def h_swish(x, *, donate_input=False):
    """Elementwise h_swish = x * relu6(x + 3) / 6. Accepts any shape (NCHW expected)."""
    orig_shape = x.shape
    n = x.size
    target_block_bytes, vmem_limit_bytes = _generation_params()

    flat = x.reshape(-1)
    rows = n // _LANES
    n_main = rows * _LANES
    tail = n - n_main

    if rows == 0:
        # Fewer than 128 elements: a kernel launch isn't worth it.
        return _h_swish_jnp(flat).reshape(orig_shape)

    if tail == 0:
        # Zero-copy path: free reshape to a lane-dense (rows, 128) slab.
        x2d = flat.reshape(rows, _LANES)
        out2d = _run_pallas_2d(x2d, target_block_bytes, vmem_limit_bytes, donate_input)
        return out2d.reshape(orig_shape)

    # Non-128-divisible size: Pallas over the aligned prefix, jnp over the
    # <128-element tail (avoids pad + slice extra HBM passes).
    main2d = flat[:n_main].reshape(rows, _LANES)
    out_main = _run_pallas_2d(main2d, target_block_bytes, vmem_limit_bytes, False)
    out_tail = _h_swish_jnp(flat[n_main:])
    return jnp.concatenate([out_main.reshape(-1), out_tail]).reshape(orig_shape)


if __name__ == "__main__":
    key = jax.random.PRNGKey(0)
    # NCHW input, small shape consistent with the module's usage.
    x = jax.random.normal(key, (2, 4, 16, 16), dtype=jnp.float32) * 4.0

    y = jax.block_until_ready(h_swish(x))

    # Reference check (pure JAX): h_swish = x * relu6(x + 3) / 6
    y_ref = x * jnp.clip(x + 3.0, 0.0, 6.0) * (1.0 / 6.0)
    assert y.shape == x.shape and y.dtype == x.dtype
    assert jnp.max(jnp.abs(y - y_ref)) < 1e-5

    print("KERNEL_OK")
</pallas_src>

<mosaic_0001>
module attributes {stable_mosaic.version = 11 : i64} {
  func.func @_h_swish_kernel(%arg0: i32, %arg1: memref<16x128xf32, #tpu.memory_space<vmem>>, %arg2: memref<16x128xf32, #tpu.memory_space<vmem>>) attributes {dimension_semantics = [#tpu.dimension_semantics<parallel>], iteration_bounds = array<i64: 1>, scalar_prefetch = 0 : i64, scratch_operands = 0 : i64, tpu.core_type = #tpu.core_type<tc>, window_params = [{transform_indices = @transform_0, window_bounds = array<i64: 16, 128>}, {transform_indices = @transform_1, window_bounds = array<i64: 16, 128>}]} {
    %c0 = arith.constant 0 : index
    %c0_0 = arith.constant 0 : index
    %0 = vector.load %arg1[%c0, %c0_0] : memref<16x128xf32, #tpu.memory_space<vmem>>, vector<16x128xf32>
    %cst = arith.constant 3.000000e+00 : f32
    %1 = vector.broadcast %cst : f32 to vector<16x128xf32>
    %2 = arith.addf %0, %1 : vector<16x128xf32>
    %cst_1 = arith.constant 0.000000e+00 : f32
    %cst_2 = arith.constant 6.000000e+00 : f32
    %3 = vector.broadcast %cst_1 : f32 to vector<16x128xf32>
    %4 = arith.maximumf %3, %2 : vector<16x128xf32>
    %5 = vector.broadcast %cst_2 : f32 to vector<16x128xf32>
    %6 = arith.minimumf %5, %4 : vector<16x128xf32>
    %cst_3 = arith.constant 0.166666672 : f32
    %7 = vector.broadcast %cst_3 : f32 to vector<16x128xf32>
    %8 = arith.mulf %6, %7 : vector<16x128xf32>
    %9 = arith.mulf %0, %8 : vector<16x128xf32>
    %c0_4 = arith.constant 0 : index
    %c0_5 = arith.constant 0 : index
    %10 = vector.load %arg2[%c0_4, %c0_5] : memref<16x128xf32, #tpu.memory_space<vmem>>, vector<16x128xf32>
    tpu.vector_store %arg2[%c0_4, %c0_5], %9 {strides = array<i32>} : memref<16x128xf32, #tpu.memory_space<vmem>>, vector<16x128xf32>,
    return
  }
  func.func @transform_0(%arg0: i32) -> (i32, i32) {
    %c0_i32 = arith.constant 0 : i32
    %c0_i32_0 = arith.constant 0 : i32
    return %arg0, %c0_i32 : i32, i32
  }
  func.func @transform_1(%arg0: i32) -> (i32, i32) {
    %c0_i32 = arith.constant 0 : i32
    %c0_i32_0 = arith.constant 0 : i32
    return %arg0, %c0_i32 : i32, i32
  }
}

</mosaic_0001>

<llo_original>
// kernel: tpu_custom_call.1
$region0: #{tpu_custom_call.1}
  #allocation0 [shape = 'u32[]', space=smem, size = 0x4, offset = 0x4, fixed_abs, tag = 'smem constant byte address 0x4 - core index']
  #allocation1 [shape = 'u32[144,128]{1,0:T(1,128)}', space=vmem, size = 0x12000, scoped, tag = 'internal scratch']
  %s0 = inlined_call_operand.hbm [shape: f32[16,128], index: 0, kind: input, shape index: {}]
  %s1 = inlined_call_operand.hbm [shape: f32[16,128], index: 1, kind: output, shape index: {}]
  %s2 = sld [smem:[#allocation0]]
  $region18: #{tpu_custom_call.1} parent=0
    _
  %s4 = ssub.s32 1, %s2
  %s5 = scalar_select 0, %s4, %s2
  $region1: #{tpu_custom_call.1} parent=0
    #allocation2 [shape = 'u8[8192]{0}', space=vmem, size = 0x2000, scoped, tag = 'input window, operand 0, single buffered']
    #allocation3 [shape = 's32[1]{0}', space=sflag, size = 0x4, scoped, tag = 'scoped memory for tpu_custom_call.1']
    #allocation4 [shape = 's32[1]{0}', space=sflag, size = 0x4, scoped, tag = 'scoped memory for tpu_custom_call.1']
    #allocation5 [shape = 'u8[8192]{0}', space=vmem, size = 0x2000, scoped, tag = 'output window, operand 0, single buffered']
    %6 = vsyncpa [#allocation3], 0
    %7 = vsyncpa [#allocation4], 0
    // Predicated region
    $region2: #{tpu_custom_call.1} parent=1 // pred_check
      _
    $region3: #{tpu_custom_call.1} parent=1 // pred_check_branch
      %9 = sbr.rel (0) target = $region5
    $region4: #{tpu_custom_call.1} parent=1 // pred_region
      %s11 = ssub.s32 256, 256
      %12 = vsyncadd [#allocation3], %s11
      %s13 = sshll.u32 [#allocation2], 4
      %s14 = int_to_ptr.vmem [resolvable:$true] %s13
      %19 = dma.hbm_to_vmem [thread:$0]  %s0, 256, %s14, [#allocation3], 128, 128, 8
    $region5: #{tpu_custom_call.1} parent=1 // pred_fallthru
      _
    // Predicated region
    $region6: #{tpu_custom_call.1} parent=1 // pred_check
      _
    $region7: #{tpu_custom_call.1} parent=1 // pred_check_branch
      %21 = sbr.rel (0) target = $region9
    $region8: #{tpu_custom_call.1} parent=1 // pred_region
      %22 = dma.done [#allocation3], 256
    $region9: #{tpu_custom_call.1} parent=1 // pred_fallthru
      _
    %v23 = vld [vmem:[#allocation2] sm:$0xff]
    %v24 = vld [vmem:[#allocation2 + $0x8] sm:$0xff]
    %v25 = vadd.f32 %v23, 3.0
    %v26 = vadd.f32 %v24, 3.0
    %v27 = vmax.f32 %v25, 0.0
    %v28 = vmax.f32 %v26, 0.0
    %v29 = vmin.f32 %v27, 6.0
    %v30 = vmin.f32 %v28, 6.0
    %v31 = vmul.f32 %v29, 0.16666667
    %v32 = vmul.f32 %v30, 0.16666667
    %v33 = vmul.f32 %v23, %v31
    %v34 = vmul.f32 %v24, %v32
    %35 = vst [vmem:[#allocation5] sm:$0xff] %v33
    %36 = vst [vmem:[#allocation5 + $0x8] sm:$0xff] %v34
    // Predicated region
    $region10: #{tpu_custom_call.1} parent=1 // pred_check
      _
    $region11: #{tpu_custom_call.1} parent=1 // pred_check_branch
      %38 = sbr.rel (0) target = $region13
    $region12: #{tpu_custom_call.1} parent=1 // pred_region
      %s40 = ssub.s32 256, 256
      %41 = vsyncadd [#allocation4], %s40
      %s42 = sshll.u32 [#allocation5], 4
      %s43 = int_to_ptr.vmem [resolvable:$true] %s42
      %48 = dma.vmem_to_hbm [thread:$0]  %s43, 256, %s1, [#allocation4], 128, 128, 8
    $region13: #{tpu_custom_call.1} parent=1 // pred_fallthru
      _
    // Predicated region
    $region14: #{tpu_custom_call.1} parent=1 // pred_check
      _
    $region15: #{tpu_custom_call.1} parent=1 // pred_check_branch
      %50 = sbr.rel (0) target = $region17
    $region16: #{tpu_custom_call.1} parent=1 // pred_region
      %51 = dma.done [#allocation4], 256
    $region17: #{tpu_custom_call.1} parent=1 // pred_fallthru
      _
    %52 = vsyncpa [#allocation3], 1
    %53 = vsyncpa [#allocation4], 1

</llo_original>
